<compile_context>
chip_gen: v7x
topology: tpu7x:2x2x1
jax: 0.10.0
libtpu: 0.0.40
codegen_flags: <defaults>
</compile_context>

<pallas_src>
import jax
import jax.numpy as jnp
from jax import lax
from jax.experimental import pallas as pl
from jax.experimental.pallas import tpu as pltpu

_EPS = 1e-12  # F.normalize default eps (denominator is clamped to eps)


def _round_up(n, m):
    return ((n + m - 1) // m) * m


def _choose_tiles(B, D, O, vmem_budget_bytes=40 * 1024 * 1024):
    """Lane-dense tiles: TB multiple of 8, TO multiple of 128, shrunk to fit
    a VMEM budget that is safe on v5e/v6e (128 MiB) and v7x (64 MiB)."""
    TB = min(256, _round_up(max(B, 1), 8))
    TO = min(512, _round_up(max(O, 1), 128))

    def need(tb, to):
        # double-buffered f32 x/w/out tiles + single bf16 normalized-weight scratch
        return 2 * (tb * D + to * D + tb * to) * 4 + to * D * 2

    while need(TB, TO) > vmem_budget_bytes and (TO > 128 or TB > 8):
        if TO > 128:
            TO = max(128, TO // 2)
        else:
            TB = max(8, TB // 2)
    return TB, TO, need(TB, TO)


def _cosine_linear_kernel(sigma_ref, x_ref, w_ref, o_ref, wn_ref):
    # grid = (num_weight_tiles, num_batch_tiles): axis 0 (j) outer/"parallel",
    # axis 1 (i) inner/"arbitrary".  The weight tile is resident across the
    # inner loop, so normalize it only when the batch-tile index is 0.
    i = pl.program_id(1)

    @pl.when(i == 0)
    def _():
        w = w_ref[...].astype(jnp.float32)
        w_ss = jnp.sum(w * w, axis=-1, keepdims=True)                # (TO, 1)
        inv_w = lax.rsqrt(jnp.maximum(w_ss, _EPS * _EPS))            # 1/max(||w||, eps)
        wn_ref[...] = (w * inv_w).astype(jnp.bfloat16)

    x = x_ref[...].astype(jnp.float32)
    x_ss = jnp.sum(x * x, axis=-1, keepdims=True)                    # (TB, 1)
    inv_x = lax.rsqrt(jnp.maximum(x_ss, _EPS * _EPS))                # 1/max(||x||, eps)

    # bf16 MXU matmul on the raw x tile and pre-normalized weight tile,
    # contracted over the feature axis; f32 accumulate.
    acc = lax.dot_general(
        x.astype(jnp.bfloat16), wn_ref[...],
        dimension_numbers=(((1,), (1,)), ((), ())),
        preferred_element_type=jnp.float32,
    )                                                                # (TB, TO)

    # Apply x-row inverse norm and sigma to the small output tile only.
    o_ref[...] = (acc * (sigma_ref[0] * inv_x)).astype(o_ref.dtype)


def cosine_linear_forward(x, weight, sigma):
    """x: (B, D), weight: (O, D), sigma: () -> {'logits': (B, O)} float32."""
    B, D = x.shape
    O, D2 = weight.shape
    assert D == D2

    TB, TO, vmem_need = _choose_tiles(B, D, O)
    Bp = _round_up(B, TB)
    Op = _round_up(O, TO)
    nj = Op // TO   # weight tiles (outer, parallel)
    ni = Bp // TB   # batch tiles (inner, arbitrary: scratch carried across it)

    xp = x if Bp == B else jnp.pad(x, ((0, Bp - B), (0, 0)))
    wp = weight if Op == O else jnp.pad(weight, ((0, Op - O), (0, 0)))
    sigma_arr = jnp.asarray(sigma, jnp.float32).reshape((1,))

    vmem_limit = int(min(vmem_need + (8 << 20), 64 << 20))

    cost = pl.CostEstimate(
        flops=2 * Bp * Op * D,
        transcendentals=Bp + Op,
        bytes_accessed=4 * (Bp * D + Op * D + Bp * Op),
    )

    grid_spec = pltpu.PrefetchScalarGridSpec(
        num_scalar_prefetch=0,
        grid=(nj, ni),
        in_specs=[
            pl.BlockSpec(memory_space=pltpu.SMEM),              # sigma (1,)
            pl.BlockSpec((TB, D), lambda j, i: (i, 0)),         # x tile
            pl.BlockSpec((TO, D), lambda j, i: (j, 0)),         # weight tile (resident over i)
        ],
        out_specs=pl.BlockSpec((TB, TO), lambda j, i: (i, j)),
        scratch_shapes=[pltpu.VMEM((TO, D), jnp.bfloat16)],     # normalized weight tile
    )

    out = pl.pallas_call(
        _cosine_linear_kernel,
        out_shape=jax.ShapeDtypeStruct((Bp, Op), x.dtype),
        grid_spec=grid_spec,
        compiler_params=pltpu.CompilerParams(
            dimension_semantics=("parallel", "arbitrary"),
            vmem_limit_bytes=vmem_limit,
        ),
        cost_estimate=cost,
    )(sigma_arr, xp, wp)

    return {"logits": out[:B, :O]}


def init_cosine_linear_params(key, in_features, out_features, nb_proxy=1):
    """Deterministic init matching nn.init.kaiming_uniform_(a=sqrt(5)):
    bound = 1/sqrt(fan_in); W ~ U(-bound, bound). sigma = 1.0."""
    total_out = out_features * nb_proxy
    bound = 1.0 / jnp.sqrt(jnp.asarray(in_features, jnp.float32))
    weight = jax.random.uniform(
        key, (total_out, in_features), jnp.float32, minval=-bound, maxval=bound
    )
    sigma = jnp.float32(1.0)
    return weight, sigma


def _ref_forward(x, w, sigma):
    xn = x / jnp.maximum(jnp.linalg.norm(x, axis=1, keepdims=True), _EPS)
    wn = w / jnp.maximum(jnp.linalg.norm(w, axis=1, keepdims=True), _EPS)
    return sigma * (xn @ wn.T)


if __name__ == "__main__":
    key = jax.random.PRNGKey(0)
    k1, k2, k3, k4 = jax.random.split(key, 4)

    # Test 1: small shapes (single grid step, output-feature padding to 128).
    B1, D1, O1 = 8, 32, 16
    x1 = jax.random.normal(k1, (B1, D1), jnp.float32)
    w1, s1 = init_cosine_linear_params(k2, D1, O1, nb_proxy=1)
    out1 = jax.block_until_ready(cosine_linear_forward(x1, w1, s1)["logits"])
    ref1 = _ref_forward(x1, w1, s1)
    assert out1.shape == (B1, O1)
    # bf16 MXU operands -> tolerance loosened vs pure-f32 reference.
    assert jnp.allclose(out1, ref1, atol=2e-2, rtol=2e-2), float(
        jnp.max(jnp.abs(out1 - ref1)))

    # Test 2: multi-tile 2x2 grid with padding on both axes and sigma != 1,
    # exercising the per-weight-tile scratch re-normalization path.
    B2, D2, O2 = 272, 96, 520
    x2 = jax.random.normal(k3, (B2, D2), jnp.float32)
    w2, _ = init_cosine_linear_params(k4, D2, O2, nb_proxy=1)
    s2 = jnp.float32(0.5)
    out2 = jax.block_until_ready(cosine_linear_forward(x2, w2, s2)["logits"])
    ref2 = _ref_forward(x2, w2, s2)
    assert out2.shape == (B2, O2)
    assert jnp.allclose(out2, ref2, atol=2e-2, rtol=2e-2), float(
        jnp.max(jnp.abs(out2 - ref2)))

    # TODO(synk): use_RP / W_rand random-projection branch and reduce_proxies
    # (nb_proxy>1, to_reduce=True) are not on the default forward path and are
    # not implemented here.
    print("KERNEL_OK")
</pallas_src>

<mosaic_0001>
module attributes {stable_mosaic.version = 11 : i64} {
  func.func @_cosine_linear_kernel(%arg0: i32, %arg1: i32, %arg2: memref<1xf32, #tpu.memory_space<smem>>, %arg3: memref<8x32xf32, #tpu.memory_space<vmem>>, %arg4: memref<128x32xf32, #tpu.memory_space<vmem>>, %arg5: memref<8x128xf32, #tpu.memory_space<vmem>>, %arg6: memref<128x32xbf16, #tpu.memory_space<vmem>>) attributes {dimension_semantics = [#tpu.dimension_semantics<parallel>, #tpu.dimension_semantics<arbitrary>], iteration_bounds = array<i64: 1, 1>, scalar_prefetch = 0 : i64, scratch_operands = 1 : i64, tpu.core_type = #tpu.core_type<tc>, window_params = [{transform_indices = @transform_0, window_bounds = array<i64: 1>}, {transform_indices = @transform_1, window_bounds = array<i64: 8, 32>}, {transform_indices = @transform_2, window_bounds = array<i64: 128, 32>}, {transform_indices = @transform_3, window_bounds = array<i64: 8, 128>}]} {
    %c0_i32 = arith.constant 0 : i32
    %0 = arith.cmpi eq, %arg1, %c0_i32 : i32
    %1 = arith.extui %0 : i1 to i32
    %c0_i32_0 = arith.constant 0 : i32
    %2 = arith.cmpi ne, %1, %c0_i32_0 : i32
    scf.if %2 {
      %c0_9 = arith.constant 0 : index
      %c0_10 = arith.constant 0 : index
      %19 = vector.load %arg4[%c0_9, %c0_10] : memref<128x32xf32, #tpu.memory_space<vmem>>, vector<128x32xf32>
      %20 = arith.mulf %19, %19 : vector<128x32xf32>
      %cst_11 = arith.constant dense<0.000000e+00> : vector<128xf32>
      %21 = vector.multi_reduction <add>, %20, %cst_11 [1] : vector<128x32xf32> to vector<128xf32>
      %22 = vector.shape_cast %21 : vector<128xf32> to vector<128x1xf32>
      %cst_12 = arith.constant 1.000000e-24 : f32
      %23 = vector.broadcast %cst_12 : f32 to vector<128x1xf32>
      %24 = arith.maximumf %22, %23 : vector<128x1xf32>
      %25 = math.rsqrt %24 : vector<128x1xf32>
      %26 = vector.broadcast %25 : vector<128x1xf32> to vector<128x32xf32>
      %27 = arith.mulf %19, %26 : vector<128x32xf32>
      %28 = arith.truncf %27 : vector<128x32xf32> to vector<128x32xbf16>
      %c0_13 = arith.constant 0 : index
      %c0_14 = arith.constant 0 : index
      %29 = vector.load %arg6[%c0_13, %c0_14] : memref<128x32xbf16, #tpu.memory_space<vmem>>, vector<128x32xbf16>
      tpu.vector_store %arg6[%c0_13, %c0_14], %28 {strides = array<i32>} : memref<128x32xbf16, #tpu.memory_space<vmem>>, vector<128x32xbf16>,
    } else {
    }
    %c0 = arith.constant 0 : index
    %c0_1 = arith.constant 0 : index
    %3 = vector.load %arg3[%c0, %c0_1] : memref<8x32xf32, #tpu.memory_space<vmem>>, vector<8x32xf32>
    %4 = arith.mulf %3, %3 : vector<8x32xf32>
    %cst = arith.constant dense<0.000000e+00> : vector<8xf32>
    %5 = vector.multi_reduction <add>, %4, %cst [1] : vector<8x32xf32> to vector<8xf32>
    %6 = vector.shape_cast %5 : vector<8xf32> to vector<8x1xf32>
    %cst_2 = arith.constant 1.000000e-24 : f32
    %7 = vector.broadcast %cst_2 : f32 to vector<8x1xf32>
    %8 = arith.maximumf %6, %7 : vector<8x1xf32>
    %9 = math.rsqrt %8 : vector<8x1xf32>
    %10 = arith.truncf %3 : vector<8x32xf32> to vector<8x32xbf16>
    %c0_3 = arith.constant 0 : index
    %c0_4 = arith.constant 0 : index
    %11 = vector.load %arg6[%c0_3, %c0_4] : memref<128x32xbf16, #tpu.memory_space<vmem>>, vector<128x32xbf16>
    %cst_5 = arith.constant dense<0.000000e+00> : vector<8x128xf32>
    %12 = tpu.matmul %10, %11, %cst_5 {dimension_numbers = #tpu.dot_dimension_numbers<[1], [1], [0], [0], [0, 0, 1, 0], [], []>} : vector<8x32xbf16>, vector<128x32xbf16>, vector<8x128xf32> -> vector<8x128xf32>
    %c0_6 = arith.constant 0 : index
    %13 = memref.load %arg2[%c0_6] : memref<1xf32, #tpu.memory_space<smem>>
    %14 = vector.broadcast %13 : f32 to vector<8x1xf32>
    %15 = arith.mulf %14, %9 : vector<8x1xf32>
    %16 = vector.broadcast %15 : vector<8x1xf32> to vector<8x128xf32>
    %17 = arith.mulf %12, %16 : vector<8x128xf32>
    %c0_7 = arith.constant 0 : index
    %c0_8 = arith.constant 0 : index
    %18 = vector.load %arg5[%c0_7, %c0_8] : memref<8x128xf32, #tpu.memory_space<vmem>>, vector<8x128xf32>
    tpu.vector_store %arg5[%c0_7, %c0_8], %17 {strides = array<i32>} : memref<8x128xf32, #tpu.memory_space<vmem>>, vector<8x128xf32>,
    return
  }
  func.func @transform_0(%arg0: i32, %arg1: i32) -> i32 {
    %c0_i32 = arith.constant 0 : i32
    %c0_i32_0 = arith.constant 0 : i32
    return %c0_i32 : i32
  }
  func.func @transform_1(%arg0: i32, %arg1: i32) -> (i32, i32) {
    %c0_i32 = arith.constant 0 : i32
    %c0_i32_0 = arith.constant 0 : i32
    return %arg1, %c0_i32 : i32, i32
  }
  func.func @transform_2(%arg0: i32, %arg1: i32) -> (i32, i32) {
    %c0_i32 = arith.constant 0 : i32
    %c0_i32_0 = arith.constant 0 : i32
    return %arg0, %c0_i32 : i32, i32
  }
  func.func @transform_3(%arg0: i32, %arg1: i32) -> (i32, i32) {
    %c0_i32 = arith.constant 0 : i32
    return %arg1, %arg0 : i32, i32
  }
}

</mosaic_0001>

<llo_original>
// kernel: tpu_custom_call.1
$region0: #{tpu_custom_call.1}
  #allocation0 [shape = 'u32[]', space=smem, size = 0x4, offset = 0x4, fixed_abs, tag = 'smem constant byte address 0x4 - core index']
  #allocation1 [shape = 'u32[144,128]{1,0:T(1,128)}', space=vmem, size = 0x12000, scoped, tag = 'internal scratch']
  #allocation2 [shape = 'bf16[128,32]{1,0:T(16,128)(2,1)}', space=vmem, size = 0x8000, scoped, tag = 'scratch operand']
  #allocation3 [shape = 'f32[1]{0:T(128)S(6)}', space=smem, size = 0x200, scoped, tag = 'scoped memory for tpu_custom_call.1']
  %s0 = inlined_call_operand.<no memory space> [shape: f32[1], index: 0, kind: input, shape index: {}]
  %s1 = inlined_call_operand.vmem [shape: f32[8,32], index: 1, kind: input, shape index: {}]
  %s2 = inlined_call_operand.vmem [shape: f32[128,32], index: 2, kind: input, shape index: {}]
  %s3 = inlined_call_operand.hbm [shape: f32[8,128], index: 3, kind: output, shape index: {}]
  %s4 = sld [smem:[#allocation0]]
  $region26: #{tpu_custom_call.1} parent=0
    _
  %s6 = ssub.s32 1, %s4
  %s7 = scalar_select 0, %s6, %s4
  %8 = sst [smem:[#allocation3]] %s0
  $region1: #{tpu_custom_call.1} parent=0
    #allocation4 [shape = 'u8[4096]{0}', space=vmem, size = 0x1000, scoped, tag = 'output window, operand 0, single buffered']
    #allocation5 [shape = 's32[1]{0}', space=sflag, size = 0x4, scoped, tag = 'scoped memory for tpu_custom_call.1']
    %9 = vsyncpa [#allocation5], 0
    // Predicated region
    $region2: #{tpu_custom_call.1} parent=1 // pred_check
      _
    $region3: #{tpu_custom_call.1} parent=1 // pred_check_branch
      %11 = sbr.rel (0) target = $region5
    $region4: #{tpu_custom_call.1} parent=1 // pred_region
      _
    $region5: #{tpu_custom_call.1} parent=1 // pred_fallthru
      _
    // Predicated region
    $region6: #{tpu_custom_call.1} parent=1 // pred_check
      _
    $region7: #{tpu_custom_call.1} parent=1 // pred_check_branch
      %13 = sbr.rel (0) target = $region9
    $region8: #{tpu_custom_call.1} parent=1 // pred_region
      _
    $region9: #{tpu_custom_call.1} parent=1 // pred_fallthru
      _
    // Predicated region
    $region10: #{tpu_custom_call.1} parent=1 // pred_check
      _
    $region11: #{tpu_custom_call.1} parent=1 // pred_check_branch
      %15 = sbr.rel (0) target = $region13
    $region12: #{tpu_custom_call.1} parent=1 // pred_region
      _
    $region13: #{tpu_custom_call.1} parent=1 // pred_fallthru
      _
    %p17 = scmp.eq.s32.totalorder 0, 0
    // Predicated region
    $region14: #{tpu_custom_call.1} parent=1 // pred_check
      %p18 = pneg %p17
    $region15: #{tpu_custom_call.1} parent=1 // pred_check_branch
      %20 = sbr.rel (%p18) target = $region17
    $region16: #{tpu_custom_call.1} parent=1 // pred_region
      %v21 = vld [vmem:[%s2] sm:$0xff]
      %v22 = vld [vmem:[%s2 + $0x8] sm:$0xff]
      %v23 = vld [vmem:[%s2 + $0x10] sm:$0xff]
      %v24 = vld [vmem:[%s2 + $0x18] sm:$0xff]
      %v25 = vld [vmem:[%s2 + $0x20] sm:$0xff]
      %v26 = vld [vmem:[%s2 + $0x28] sm:$0xff]
      %v27 = vld [vmem:[%s2 + $0x30] sm:$0xff]
      %v28 = vld [vmem:[%s2 + $0x38] sm:$0xff]
      %v29 = vld [vmem:[%s2 + $0x40] sm:$0xff]
      %v30 = vld [vmem:[%s2 + $0x48] sm:$0xff]
      %v31 = vld [vmem:[%s2 + $0x50] sm:$0xff]
      %v32 = vld [vmem:[%s2 + $0x58] sm:$0xff]
      %v33 = vld [vmem:[%s2 + $0x60] sm:$0xff]
      %v34 = vld [vmem:[%s2 + $0x68] sm:$0xff]
      %v35 = vld [vmem:[%s2 + $0x70] sm:$0xff]
      %v36 = vld [vmem:[%s2 + $0x78] sm:$0xff]
      %v37 = vmul.f32 %v21, %v21
      %v38 = vmul.f32 %v22, %v22
      %v39 = vmul.f32 %v23, %v23
      %v40 = vmul.f32 %v24, %v24
      %v41 = vmul.f32 %v25, %v25
      %v42 = vmul.f32 %v26, %v26
      %v43 = vmul.f32 %v27, %v27
      %v44 = vmul.f32 %v28, %v28
      %v45 = vmul.f32 %v29, %v29
      %v46 = vmul.f32 %v30, %v30
      %v47 = vmul.f32 %v31, %v31
      %v48 = vmul.f32 %v32, %v32
      %v49 = vmul.f32 %v33, %v33
      %v50 = vmul.f32 %v34, %v34
      %v51 = vmul.f32 %v35, %v35
      %v52 = vmul.f32 %v36, %v36
      %vm53 = vcmask 261120
      %v54 = vsel %vm53, %v37, 0.0
      %55 = vadd.xlane.f32.xlu0 %v54
      %v56 = vpop.xlane.xlu0 %55
      %v57 = vsel %vm53, %v38, 0.0
      %58 = vadd.xlane.f32.xlu0 %v57
      %v59 = vpop.xlane.xlu0 %58
      %v60 = vsel %vm53, %v39, 0.0
      %61 = vadd.xlane.f32.xlu0 %v60
      %v62 = vpop.xlane.xlu0 %61
      %v63 = vsel %vm53, %v40, 0.0
      %64 = vadd.xlane.f32.xlu0 %v63
      %v65 = vpop.xlane.xlu0 %64
      %v66 = vsel %vm53, %v41, 0.0
      %67 = vadd.xlane.f32.xlu0 %v66
      %v68 = vpop.xlane.xlu0 %67
      %v69 = vsel %vm53, %v42, 0.0
      %70 = vadd.xlane.f32.xlu0 %v69
      %v71 = vpop.xlane.xlu0 %70
      %v72 = vsel %vm53, %v43, 0.0
      %73 = vadd.xlane.f32.xlu0 %v72
      %v74 = vpop.xlane.xlu0 %73
      %v75 = vsel %vm53, %v44, 0.0
      %76 = vadd.xlane.f32.xlu0 %v75
      %v77 = vpop.xlane.xlu0 %76
      %v78 = vsel %vm53, %v45, 0.0
      %79 = vadd.xlane.f32.xlu0 %v78
      %v80 = vpop.xlane.xlu0 %79
      %v81 = vsel %vm53, %v46, 0.0
      %82 = vadd.xlane.f32.xlu0 %v81
      %v83 = vpop.xlane.xlu0 %82
      %v84 = vsel %vm53, %v47, 0.0
      %85 = vadd.xlane.f32.xlu0 %v84
      %v86 = vpop.xlane.xlu0 %85
      %v87 = vsel %vm53, %v48, 0.0
      %88 = vadd.xlane.f32.xlu0 %v87
      %v89 = vpop.xlane.xlu0 %88
      %v90 = vsel %vm53, %v49, 0.0
      %91 = vadd.xlane.f32.xlu0 %v90
      %v92 = vpop.xlane.xlu0 %91
      %v93 = vsel %vm53, %v50, 0.0
      %94 = vadd.xlane.f32.xlu0 %v93
      %v95 = vpop.xlane.xlu0 %94
      %v96 = vsel %vm53, %v51, 0.0
      %97 = vadd.xlane.f32.xlu0 %v96
      %v98 = vpop.xlane.xlu0 %97
      %v99 = vsel %vm53, %v52, 0.0
      %100 = vadd.xlane.f32.xlu0 %v99
      %v101 = vpop.xlane.xlu0 %100
      %v102 = vmax.f32 %v56, 1e-24
      %v103 = vmax.f32 %v59, 1e-24
      %v104 = vmax.f32 %v62, 1e-24
      %v105 = vmax.f32 %v65, 1e-24
      %v106 = vmax.f32 %v68, 1e-24
      %v107 = vmax.f32 %v71, 1e-24
      %v108 = vmax.f32 %v74, 1e-24
      %v109 = vmax.f32 %v77, 1e-24
      %v110 = vmax.f32 %v80, 1e-24
      %v111 = vmax.f32 %v83, 1e-24
      %v112 = vmax.f32 %v86, 1e-24
      %v113 = vmax.f32 %v89, 1e-24
      %v114 = vmax.f32 %v92, 1e-24
      %v115 = vmax.f32 %v95, 1e-24
      %v116 = vmax.f32 %v98, 1e-24
      %v117 = vmax.f32 %v101, 1e-24
      %v118 = vrsqrt.pop %v102
      %v119 = vrsqrt.pop %v103
      %v120 = vrsqrt.pop %v104
      %v121 = vrsqrt.pop %v105
      %v122 = vrsqrt.pop %v106
      %v123 = vrsqrt.pop %v107
      %v124 = vrsqrt.pop %v108
      %v125 = vrsqrt.pop %v109
      %v126 = vrsqrt.pop %v110
      %v127 = vrsqrt.pop %v111
      %v128 = vrsqrt.pop %v112
      %v129 = vrsqrt.pop %v113
      %v130 = vrsqrt.pop %v114
      %v131 = vrsqrt.pop %v115
      %v132 = vrsqrt.pop %v116
      %v133 = vrsqrt.pop %v117
      %v134 = vmul.f32 %v21, %v118
      %v135 = vmul.f32 %v22, %v119
      %v136 = vmul.f32 %v23, %v120
      %v137 = vmul.f32 %v24, %v121
      %v138 = vmul.f32 %v25, %v122
      %v139 = vmul.f32 %v26, %v123
      %v140 = vmul.f32 %v27, %v124
      %v141 = vmul.f32 %v28, %v125
      %v142 = vmul.f32 %v29, %v126
      %v143 = vmul.f32 %v30, %v127
      %v144 = vmul.f32 %v31, %v128
      %v145 = vmul.f32 %v32, %v129
      %v146 = vmul.f32 %v33, %v130
      %v147 = vmul.f32 %v34, %v131
      %v148 = vmul.f32 %v35, %v132
      %v149 = vmul.f32 %v36, %v133
      %v150 = vpack.c.bf16 %v135, %v134
      %v151 = vpack.c.bf16 %v137, %v136
      %v152 = vpack.c.bf16 %v139, %v138
      %v153 = vpack.c.bf16 %v141, %v140
      %v154 = vpack.c.bf16 %v143, %v142
      %v155 = vpack.c.bf16 %v145, %v144
      %v156 = vpack.c.bf16 %v147, %v146
      %v157 = vpack.c.bf16 %v149, %v148
      %158 = vst.msk [vmem:[#allocation2] sm:$0xff] %vm53, %v150
      %159 = vst.msk [vmem:[#allocation2 + $0x8] sm:$0xff] %vm53, %v151
      %160 = vst.msk [vmem:[#allocation2 + $0x10] sm:$0xff] %vm53, %v152
      %161 = vst.msk [vmem:[#allocation2 + $0x18] sm:$0xff] %vm53, %v153
      %162 = vst.msk [vmem:[#allocation2 + $0x20] sm:$0xff] %vm53, %v154
      %163 = vst.msk [vmem:[#allocation2 + $0x28] sm:$0xff] %vm53, %v155
      %164 = vst.msk [vmem:[#allocation2 + $0x30] sm:$0xff] %vm53, %v156
      %165 = vst.msk [vmem:[#allocation2 + $0x38] sm:$0xff] %vm53, %v157
    $region17: #{tpu_custom_call.1} parent=1 // pred_fallthru
      _
    %v166 = vld [vmem:[%s1] sm:$0xff]
    %v167 = vmul.f32 %v166, %v166
    %vm168 = vcmask 261120
    %v169 = vsel %vm168, %v167, 0.0
    %170 = vadd.xlane.f32.xlu0 %v169
    %v171 = vpop.xlane.xlu0 %170
    %v172 = vmax.f32 %v171, 1e-24
    %v173 = vrsqrt.pop %v172
    %v174 = vpack.c.bf16 %v166, %v166
    %v175 = vld [vmem:[#allocation2] sm:$0xff]
    %v176 = vld [vmem:[#allocation2 + $0x8] sm:$0xff]
    %v177 = vld [vmem:[#allocation2 + $0x10] sm:$0xff]
    %v178 = vld [vmem:[#allocation2 + $0x18] sm:$0xff]
    %v179 = vld [vmem:[#allocation2 + $0x20] sm:$0xff]
    %v180 = vld [vmem:[#allocation2 + $0x28] sm:$0xff]
    %v181 = vld [vmem:[#allocation2 + $0x30] sm:$0xff]
    %v182 = vld [vmem:[#allocation2 + $0x38] sm:$0xff]
    %v184 = vsel %vm168, %v174, 0
    %v187 = vsel %vm168, %v175, 0
    %v190 = vsel %vm168, %v176, 0
    %v193 = vsel %vm168, %v177, 0
    %v196 = vsel %vm168, %v178, 0
    %v199 = vsel %vm168, %v179, 0
    %v202 = vsel %vm168, %v180, 0
    %v205 = vsel %vm168, %v181, 0
    %v208 = vsel %vm168, %v182, 0
    %210 = vmatprep.subr.bf16.mxu0 0
    %211 = vmatpush1.bf16.xpose.msra.mxu0 %v187
    %212 = vmatprep.subr.bf16.mxu0 0
    %213 = vmatpush1.bf16.xpose.msra.mxu0 %v190
    %214 = vmatprep.subr.bf16.mxu0 0
    %215 = vmatpush1.bf16.xpose.msra.mxu0 %v193
    %216 = vmatprep.subr.bf16.mxu0 0
    %217 = vmatpush1.bf16.xpose.msra.mxu0 %v196
    %218 = vmatprep.subr.bf16.mxu0 0
    %219 = vmatpush1.bf16.xpose.msra.mxu0 %v199
    %220 = vmatprep.subr.bf16.mxu0 0
    %221 = vmatpush1.bf16.xpose.msra.mxu0 %v202
    %222 = vmatprep.subr.bf16.mxu0 0
    %223 = vmatpush1.bf16.xpose.msra.mxu0 %v205
    %224 = vmatprep.subr.bf16.mxu0 0
    %225 = vmatpush1.bf16.xpose.msra.mxu0 %v208
    %226 = vmatprep.subr.bf16.mxu0 0
    %227 = vmatpush1.bf16.xpose.msra.mxu0 0
    %228 = vmatprep.subr.bf16.mxu0 0
    %229 = vmatpush1.bf16.xpose.msra.mxu0 0
    %230 = vmatprep.subr.bf16.mxu0 0
    %231 = vmatpush1.bf16.xpose.msra.mxu0 0
    %232 = vmatprep.subr.bf16.mxu0 0
    %233 = vmatpush1.bf16.xpose.msra.mxu0 0
    %234 = vmatprep.subr.bf16.mxu0 0
    %235 = vmatpush1.bf16.xpose.msra.mxu0 0
    %236 = vmatprep.subr.bf16.mxu0 0
    %237 = vmatpush1.bf16.xpose.msra.mxu0 0
    %238 = vmatprep.subr.bf16.mxu0 0
    %239 = vmatpush1.bf16.xpose.msra.mxu0 0
    %240 = vmatprep.subr.bf16.mxu0 0
    %241 = vmatpush1.bf16.xpose.msra.mxu0 0
    %242 = vmatprep.mubr.bf16.mxu0 0
    %243 = vmatmul.mubr.bf16.gmra.mrb[0].mxu0 %v184
    %v244 = vpop.f32.mrb[0].mxu0
    %v245 = vadd.f32 0.0, %v244
    %v246 = vpop.f32.mrb[0].mxu0
    %v247 = vpop.f32.mrb[0].mxu0
    %v248 = vpop.f32.mrb[0].mxu0
    %249 = vdwg.mxu0
    %s250 = sld [smem:[#allocation3]]
    %v251 = vstv %s250
    %v252 = vmul.f32 %v251, %v173
    %v253 = vmul.f32 %v245, %v252
    %254 = vst [vmem:[#allocation4] sm:$0xff] %v253
    // Predicated region
    $region18: #{tpu_custom_call.1} parent=1 // pred_check
      _
    $region19: #{tpu_custom_call.1} parent=1 // pred_check_branch
      %256 = sbr.rel (0) target = $region21
    $region20: #{tpu_custom_call.1} parent=1 // pred_region
      %s258 = ssub.s32 128, 128
      %259 = vsyncadd [#allocation5], %s258
      %s261 = sshll.u32 [#allocation4], 4
      %s262 = int_to_ptr.vmem [resolvable:$true] %s261
      %264 = dma.vmem_to_hbm [thread:$0]  %s262, 128, %s3, [#allocation5]
    $region21: #{tpu_custom_call.1} parent=1 // pred_fallthru
      _
    // Predicated region
    $region22: #{tpu_custom_call.1} parent=1 // pred_check
      _
    $region23: #{tpu_custom_call.1} parent=1 // pred_check_branch
      %266 = sbr.rel (0) target = $region25
    $region24: #{tpu_custom_call.1} parent=1 // pred_region
      %267 = dma.done [#allocation5], 128
    $region25: #{tpu_custom_call.1} parent=1 // pred_fallthru
      _
    %268 = vsyncpa [#allocation5], 1

</llo_original>
